<compile_context>
chip_gen: v7x
topology: tpu7x:2x2x1
jax: 0.10.0
libtpu: 0.0.40
codegen_flags: <defaults>
</compile_context>

<pallas_src>
import jax
import jax.numpy as jnp
from jax.experimental import pallas as pl
from jax.experimental.pallas import tpu as pltpu


def _hbm_copy_kernel(x_hbm, o_hbm, sem):
    # Single HBM->HBM DMA: no VMEM staging, no vld/vst through vregs.
    cp = pltpu.make_async_copy(x_hbm, o_hbm, sem)
    cp.start()
    cp.wait()


@jax.jit
def _materialized_copy(x: jnp.ndarray) -> jnp.ndarray:
    """Materialize a fresh HBM buffer holding x via one HBM->HBM DMA.

    No grid, no VMEM tiling, no padding: both refs stay in place
    (memory_space=pl.ANY) and the copy runs at pure DMA rate.
    """
    return pl.pallas_call(
        _hbm_copy_kernel,
        out_shape=jax.ShapeDtypeStruct(x.shape, x.dtype),
        in_specs=[pl.BlockSpec(memory_space=pl.ANY)],
        out_specs=pl.BlockSpec(memory_space=pl.ANY),
        scratch_shapes=[pltpu.SemaphoreType.DMA(())],
    )(x)


class BaseDecoder:
    """JAX/Pallas mirror of the abstract PyTorch BaseDecoder.

    Holds the constructor attributes (latent_dims, image_size). forward()
    is the identity pass-through the abstract base class semantically
    defines: the fast path returns x untouched; an optional `materialize`
    flag routes through the Pallas HBM->HBM DMA kernel when a fresh buffer
    is required (e.g. across a donation boundary).
    """

    def __init__(self, latent_dim: int, image_size: int) -> None:
        self.latent_dims = latent_dim
        self.image_size = image_size

    def forward(self, x: jnp.ndarray, materialize: bool = False) -> jnp.ndarray:
        if not materialize:
            # Identity: the fastest correct implementation is to not move
            # the bytes at all (perf-review recommendation #2).
            return x
        return _materialized_copy(x)

    def __call__(self, x: jnp.ndarray, materialize: bool = False) -> jnp.ndarray:
        return self.forward(x, materialize=materialize)


if __name__ == "__main__":
    latent_dim = 32
    image_size = 16
    batch = 2

    key = jax.random.PRNGKey(0)
    # Latent vector input: (batch, latent_dim)
    z = jax.random.normal(key, (batch, latent_dim), dtype=jnp.float32)

    dec = BaseDecoder(latent_dim=latent_dim, image_size=image_size)

    # Fast path (pure identity, no data movement).
    out_fast = dec(z)
    out_fast = jax.block_until_ready(out_fast)
    assert out_fast.shape == (batch, latent_dim)
    assert out_fast.dtype == z.dtype
    assert bool(jnp.allclose(out_fast, z)), "identity fast path mismatch"

    # Pallas kernel path: materialized copy via a single HBM->HBM DMA.
    out_copy = dec(z, materialize=True)
    out_copy = jax.block_until_ready(out_copy)
    assert out_copy.shape == (batch, latent_dim)
    assert out_copy.dtype == z.dtype
    assert bool(jnp.allclose(out_copy, z)), "HBM->HBM DMA copy mismatch"

    print("KERNEL_OK")
</pallas_src>

<mosaic_0001>
module attributes {stable_mosaic.version = 11 : i64} {
  func.func @_hbm_copy_kernel(%arg0: memref<2x32xf32, #tpu.memory_space<any>>, %arg1: memref<2x32xf32, #tpu.memory_space<any>>, %arg2: memref<!tpu.dma_semaphore, #tpu.memory_space<semaphore_mem>>) attributes {dimension_semantics = [], scalar_prefetch = 0 : i64, scratch_operands = 1 : i64, tpu.core_type = #tpu.core_type<tc>} {
    tpu.enqueue_dma source(%arg0 : memref<2x32xf32, #tpu.memory_space<any>>) target(%arg1 : memref<2x32xf32, #tpu.memory_space<any>>) target_semaphore(%arg2 : memref<!tpu.dma_semaphore, #tpu.memory_space<semaphore_mem>>)
    tpu.wait_dma2 semaphore(%arg2 : memref<!tpu.dma_semaphore, #tpu.memory_space<semaphore_mem>>) src(%arg0 : memref<2x32xf32, #tpu.memory_space<any>>) dst(%arg1 : memref<2x32xf32, #tpu.memory_space<any>>)
    return
  }
}

</mosaic_0001>

<llo_original>
// kernel: _materialized_copy.1
$region0: #{_materialized_copy.1}
  #allocation0 [shape = 'u32[]', space=smem, size = 0x4, offset = 0x4, fixed_abs, tag = 'smem constant byte address 0x4 - core index']
  #allocation1 [shape = 'u32[144,128]{1,0:T(1,128)}', space=vmem, size = 0x12000, scoped, tag = 'internal scratch']
  #allocation2 [shape = 's32[1]{0}', space=sflag, size = 0x4, scoped, tag = 'scratch operand']
  #allocation3 [shape = 's32[]', space=sflag, size = 0x4, offset = 0, fixed_abs, tag = 'sflag constant byte address 0x0 - dummy sync flag']
  #allocation4 [shape = 'u32[0]{0}', space=smem, size = 0, offset = 0, fixed_abs, tag = 'smem constant byte address 0x0 - null']
  %s0 = inlined_call_operand.hbm [shape: f32[2,32], index: 0, kind: input, shape index: {}]
  %s1 = inlined_call_operand.hbm [shape: f32[2,32], index: 1, kind: output, shape index: {}]
  %s2 = sld [smem:[#allocation0]]
  $region2: #{_materialized_copy.1} parent=0
    _
  %s4 = ssub.s32 1, %s2
  %s5 = scalar_select 0, %s4, %s2
  %s7 = sshll.u32 1, 14
  %s8 = sxor.u32 4294967295, %s7
  %s11 = sshll.u32 3, 24
  %s12 = sxor.u32 4294967295, %s11
  %s13 = sand.u32 0, %s12
  %s15 = sor.u32 %s13, 0
  %18 = dma.general %s0, 32, %s1, [#allocation2], [#allocation3], [#allocation4], %s15, 0
  %s19 = smul.u32 2, 1
  %s20 = sshll.u32 %s19, 4
  %21 = dma.done [#allocation2], %s20
  %22 = vsyncmov [#allocation2]
  %s23 = vpop.sfrf %22
  %p24 = scmp.eq.s32.totalorder %s23, 0
  %p25 = pneg %p24
  %27 = shalt.err (%p25)

</llo_original>
